<compile_context>
chip_gen: v7x
topology: tpu7x:2x2x1
jax: 0.10.0
libtpu: 0.0.40
codegen_flags: <defaults>
</compile_context>

<pallas_src>
import jax
import jax.numpy as jnp
from jax.experimental import pallas as pl
from jax.experimental.pallas import tpu as pltpu


def _round_up(a: int, b: int) -> int:
    return (a + b - 1) // b * b


def _patch_embed_kernel(p_ref, w_ref, b_ref, o_ref):
    # One M-tile of patches; full K and full (padded) E resident in VMEM.
    acc = jnp.dot(p_ref[...], w_ref[...], preferred_element_type=jnp.float32)
    o_ref[...] = (acc + b_ref[...]).astype(o_ref.dtype)


def _resident_spec(block_shape):
    """Constant-index BlockSpec (weight / bias): single-buffer it.

    The index_map never changes, so no 'next' block is ever prefetched;
    Buffered(1) frees the second VMEM copy (matters most on v7x's 64 MiB).
    """
    try:
        return pl.BlockSpec(block_shape, lambda i: (0, 0),
                            pipeline_mode=pl.Buffered(1))
    except TypeError:  # older jax without the pipeline_mode kwarg
        return pl.BlockSpec(block_shape, lambda i: (0, 0))


def patch_embed_2d(x, weight, bias, patch_size, *, flatten=True,
                   tile_m=None, compute_dtype=jnp.bfloat16, out_dtype=None):
    """ViT patch embedding.

    x:      [B, C, H, W]
    weight: [E, C, p, p]   (PyTorch Conv2d weight layout)
    bias:   [E]
    Returns [B, num_patches, E] if flatten else [B, E, H/p, W/p].
    compute_dtype=jnp.float32 for bit-sensitive users (bf16 streams by default,
    accumulation is always f32).  out_dtype defaults to x.dtype.
    """
    B, C, H, W = x.shape
    E = weight.shape[0]
    p = patch_size
    assert H % p == 0 and W % p == 0
    nh, nw = H // p, W // p
    num_patches = nh * nw

    M = B * num_patches
    K = C * p * p
    out_dtype = x.dtype if out_dtype is None else out_dtype

    # Cast BEFORE the rearrangement: if XLA does materialize the transposed
    # copy despite allow_input_fusion, it is bf16 (half the HBM bytes), not f32.
    if x.dtype != compute_dtype:
        x = x.astype(compute_dtype)

    # ---- patch extraction: (c, kh, kw) K-order matches Conv2d flattening ----
    # [B, C, nh, p, nw, p] -> [B, nh, nw, C, p, p] -> [M, K]
    patches = x.reshape(B, C, nh, p, nw, p)
    patches = patches.transpose(0, 2, 4, 1, 3, 5)
    patches = patches.reshape(M, K)

    # Conv2d weight [E, C, p, p] -> [K, E];  bias -> [1, E] (kept f32)
    w_flat = weight.reshape(E, K).T.astype(compute_dtype)
    b_flat = bias.reshape(1, E).astype(jnp.float32)

    # Lane-dense output columns (unmasked vst).  Minimal 128-granularity pad
    # keeps extra output-write traffic low on the HBM-bound path; typical
    # embed dims (256/512/768/1024) already land on 256 for the big MXUs.
    E_pad = _round_up(E, 128)
    if E_pad != E:
        w_flat = jnp.pad(w_flat, ((0, 0), (0, E_pad - E)))
        b_flat = jnp.pad(b_flat, ((0, 0), (0, E_pad - E)))

    c_bytes = jnp.dtype(compute_dtype).itemsize
    o_bytes = jnp.dtype(out_dtype).itemsize

    # ---- tile_m derived from a VMEM budget (not a constant) ----------------
    # 48 MiB is safe on every generation (v5e/v6e: 128 MiB physical,
    # v7x: 64 MiB per TC, leaving >= 8-16 MiB compiler headroom).
    vmem_budget = 48 << 20
    fixed_bytes = K * E_pad * c_bytes + E_pad * 4            # resident w + b
    per_row = 2 * K * c_bytes + 2 * E_pad * o_bytes          # dbl-buffered in/out
    tile_cap = max(256, (vmem_budget - fixed_bytes) // per_row)
    if tile_m is None:
        tile_m = 2048                                        # amortize ~0.35us/step
    tile_m = min(tile_m, tile_cap)
    tile_m = max(256, tile_m // 256 * 256)                   # MXU-friendly rows
    if M >= 4 * 256:
        # >= 4 grid steps so both TensorCores (v7x) get work and can pipeline.
        tile_m = min(tile_m, _round_up(pl.cdiv(M, 4), 256))
    if tile_m >= M:
        tile_m = _round_up(M, 8)                             # single (partial) block
    grid_m = pl.cdiv(M, tile_m)                              # no explicit M pad;
                                                             # Pallas masks the
                                                             # partial last block.

    vmem_need = (2 * tile_m * K * c_bytes          # patch tiles (double-buffered)
                 + K * E_pad * c_bytes             # weight (single-buffered)
                 + E_pad * 4                       # bias   (single-buffered)
                 + 2 * tile_m * E_pad * o_bytes)   # output tiles (double-buffered)
    vmem_limit = int(min(max(vmem_need + (8 << 20), 32 << 20), 100 << 20))

    cost = pl.CostEstimate(
        flops=2 * M * K * E_pad,
        transcendentals=0,
        bytes_accessed=(M * K * c_bytes + K * E_pad * c_bytes
                        + M * E_pad * o_bytes + E_pad * 4),
    )

    out = pl.pallas_call(
        _patch_embed_kernel,
        out_shape=jax.ShapeDtypeStruct((M, E_pad), out_dtype),
        grid_spec=pltpu.PrefetchScalarGridSpec(
            num_scalar_prefetch=0,
            grid=(grid_m,),
            in_specs=[
                pl.BlockSpec((tile_m, K), lambda i: (i, 0)),
                _resident_spec((K, E_pad)),        # resident weight
                _resident_spec((1, E_pad)),        # resident bias
            ],
            out_specs=pl.BlockSpec((tile_m, E_pad), lambda i: (i, 0)),
        ),
        compiler_params=pltpu.CompilerParams(
            dimension_semantics=("parallel",),
            vmem_limit_bytes=vmem_limit,
            # Ask XLA to fold the convert/reshape/transpose chain into the
            # pallas_call input DMA instead of materializing [M, K] in HBM.
            allow_input_fusion=[True, False, False],
        ),
        cost_estimate=cost,
    )(patches, w_flat, b_flat)

    if E_pad != E:
        out = out[:, :E]
    if flatten:
        return out.reshape(B, num_patches, E)                # [B, N, E]
    # non-flatten path: NCHW-style conv output [B, E, nh, nw]
    return out.reshape(B, nh, nw, E).transpose(0, 3, 1, 2)


if __name__ == "__main__":
    # Small shapes consistent with the module: img_size=(16,16), patch=4,
    # in_chans=4, embed_dim=32, batch=2  -> num_patches = 16.
    B, C, H, W = 2, 4, 16, 16
    p, E = 4, 32

    key = jax.random.PRNGKey(0)
    kx, kw, kb = jax.random.split(key, 3)
    x = jax.random.normal(kx, (B, C, H, W), dtype=jnp.float32)
    weight = jax.random.normal(kw, (E, C, p, p), dtype=jnp.float32) * 0.02
    bias = jax.random.normal(kb, (E,), dtype=jnp.float32) * 0.02

    fn = jax.jit(lambda xx, ww, bb: patch_embed_2d(xx, ww, bb, p, flatten=True))
    out = jax.block_until_ready(fn(x, weight, bias))
    assert out.shape == (B, (H // p) * (W // p), E), out.shape

    # Pure-JAX f32 reference (strided conv == per-patch linear projection).
    nh, nw = H // p, W // p
    ref_patches = x.reshape(B, C, nh, p, nw, p).transpose(0, 2, 4, 1, 3, 5)
    ref_patches = ref_patches.reshape(B, nh * nw, C * p * p)
    ref = jnp.einsum("bnk,ek->bne", ref_patches,
                     weight.reshape(E, C * p * p)) + bias[None, None, :]
    # Loose tolerance: kernel streams bf16 inputs (accumulation is f32).
    err = float(jnp.max(jnp.abs(out - ref)))
    assert jnp.allclose(out, ref, atol=3e-2, rtol=3e-2), err

    print("KERNEL_OK")
</pallas_src>

<mosaic_0001>
module attributes {stable_mosaic.version = 11 : i64} {
  func.func @_patch_embed_kernel(%arg0: i32, %arg1: memref<32x64xbf16, #tpu.memory_space<vmem>>, %arg2: memref<64x128xbf16, #tpu.memory_space<vmem>>, %arg3: memref<1x128xf32, #tpu.memory_space<vmem>>, %arg4: memref<32x128xf32, #tpu.memory_space<vmem>>) attributes {dimension_semantics = [#tpu.dimension_semantics<parallel>], iteration_bounds = array<i64: 1>, scalar_prefetch = 0 : i64, scratch_operands = 0 : i64, tpu.core_type = #tpu.core_type<tc>, window_params = [{transform_indices = @transform_0, window_bounds = array<i64: 32, 64>}, {pipeline_mode = #tpu.pipeline_mode<synchronous>, transform_indices = @transform_1, window_bounds = array<i64: 64, 128>}, {pipeline_mode = #tpu.pipeline_mode<synchronous>, transform_indices = @transform_2, window_bounds = array<i64: 1, 128>}, {transform_indices = @transform_3, window_bounds = array<i64: 32, 128>}]} {
    %c0 = arith.constant 0 : index
    %c0_0 = arith.constant 0 : index
    %0 = vector.load %arg1[%c0, %c0_0] : memref<32x64xbf16, #tpu.memory_space<vmem>>, vector<32x64xbf16>
    %c0_1 = arith.constant 0 : index
    %c0_2 = arith.constant 0 : index
    %1 = vector.load %arg2[%c0_1, %c0_2] : memref<64x128xbf16, #tpu.memory_space<vmem>>, vector<64x128xbf16>
    %cst = arith.constant dense<0.000000e+00> : vector<32x128xf32>
    %2 = tpu.matmul %0, %1, %cst {dimension_numbers = #tpu.dot_dimension_numbers<[1], [0], [0], [1], [0, 0, 1, 1], [], []>} : vector<32x64xbf16>, vector<64x128xbf16>, vector<32x128xf32> -> vector<32x128xf32>
    %c0_3 = arith.constant 0 : index
    %c0_4 = arith.constant 0 : index
    %3 = vector.load %arg3[%c0_3, %c0_4] : memref<1x128xf32, #tpu.memory_space<vmem>>, vector<1x128xf32>
    %4 = vector.broadcast %3 : vector<1x128xf32> to vector<32x128xf32>
    %5 = arith.addf %2, %4 : vector<32x128xf32>
    %c0_5 = arith.constant 0 : index
    %c0_6 = arith.constant 0 : index
    %6 = vector.load %arg4[%c0_5, %c0_6] : memref<32x128xf32, #tpu.memory_space<vmem>>, vector<32x128xf32>
    tpu.vector_store %arg4[%c0_5, %c0_6], %5 {strides = array<i32>} : memref<32x128xf32, #tpu.memory_space<vmem>>, vector<32x128xf32>,
    return
  }
  func.func @transform_0(%arg0: i32) -> (i32, i32) {
    %c0_i32 = arith.constant 0 : i32
    %c0_i32_0 = arith.constant 0 : i32
    return %arg0, %c0_i32 : i32, i32
  }
  func.func @transform_1(%arg0: i32) -> (i32, i32) {
    %c0_i32 = arith.constant 0 : i32
    %c0_i32_0 = arith.constant 0 : i32
    %c0_i32_1 = arith.constant 0 : i32
    return %c0_i32, %c0_i32_0 : i32, i32
  }
  func.func @transform_2(%arg0: i32) -> (i32, i32) {
    %c0_i32 = arith.constant 0 : i32
    %c0_i32_0 = arith.constant 0 : i32
    %c0_i32_1 = arith.constant 0 : i32
    return %c0_i32, %c0_i32_0 : i32, i32
  }
  func.func @transform_3(%arg0: i32) -> (i32, i32) {
    %c0_i32 = arith.constant 0 : i32
    %c0_i32_0 = arith.constant 0 : i32
    return %arg0, %c0_i32 : i32, i32
  }
}

</mosaic_0001>

<llo_original>
// kernel: _lambda_.1
$region0: #{_lambda_.1}
  #allocation0 [shape = 'u32[]', space=smem, size = 0x4, offset = 0x4, fixed_abs, tag = 'smem constant byte address 0x4 - core index']
  #allocation1 [shape = 'u32[144,128]{1,0:T(1,128)}', space=vmem, size = 0x12000, scoped, tag = 'internal scratch']
  %s0 = inlined_call_operand.vmem [shape: bf16[32,64], index: 0, kind: input, shape index: {}]
  %s1 = inlined_call_operand.vmem [shape: bf16[64,128], index: 1, kind: input, shape index: {}]
  %s2 = inlined_call_operand.vmem [shape: f32[1,128], index: 2, kind: input, shape index: {}]
  %s3 = inlined_call_operand.hbm [shape: f32[32,128], index: 3, kind: output, shape index: {}]
  %s4 = sld [smem:[#allocation0]]
  $region22: #{_lambda_.1} parent=0
    _
  %s6 = ssub.s32 1, %s4
  %s7 = scalar_select 0, %s6, %s4
  $region1: #{_lambda_.1} parent=0
    #allocation2 [shape = 'u8[16384]{0}', space=vmem, size = 0x4000, scoped, tag = 'output window, operand 0, single buffered']
    #allocation3 [shape = 's32[1]{0}', space=sflag, size = 0x4, scoped, tag = 'scoped memory for _lambda_.1']
    %8 = vsyncpa [#allocation3], 0
    // Predicated region
    $region2: #{_lambda_.1} parent=1 // pred_check
      _
    $region3: #{_lambda_.1} parent=1 // pred_check_branch
      %10 = sbr.rel (0) target = $region5
    $region4: #{_lambda_.1} parent=1 // pred_region
      _
    $region5: #{_lambda_.1} parent=1 // pred_fallthru
      _
    // Predicated region
    $region6: #{_lambda_.1} parent=1 // pred_check
      _
    $region7: #{_lambda_.1} parent=1 // pred_check_branch
      %12 = sbr.rel (0) target = $region9
    $region8: #{_lambda_.1} parent=1 // pred_region
      _
    $region9: #{_lambda_.1} parent=1 // pred_fallthru
      _
    // Predicated region
    $region10: #{_lambda_.1} parent=1 // pred_check
      _
    $region11: #{_lambda_.1} parent=1 // pred_check_branch
      %14 = sbr.rel (0) target = $region13
    $region12: #{_lambda_.1} parent=1 // pred_region
      _
    $region13: #{_lambda_.1} parent=1 // pred_fallthru
      _
    %v16 = vld [vmem:[%s0] sm:$0xf]
    %v17 = vld [vmem:[%s0 + $0x4] sm:$0xf]
    %v18 = vld [vmem:[%s0 + $0x8] sm:$0xf]
    %v19 = vld [vmem:[%s0 + $0xc] sm:$0xf]
    %v20 = vld [vmem:[%s1] sm:$0xf]
    %v21 = vld [vmem:[%s1 + $0x4] sm:$0xf]
    %v22 = vld [vmem:[%s1 + $0x8] sm:$0xf]
    %v23 = vld [vmem:[%s1 + $0xc] sm:$0xf]
    %v24 = vld [vmem:[%s1 + $0x10] sm:$0xf]
    %v25 = vld [vmem:[%s1 + $0x14] sm:$0xf]
    %v26 = vld [vmem:[%s1 + $0x18] sm:$0xf]
    %v27 = vld [vmem:[%s1 + $0x1c] sm:$0xf]
    %v28 = vld [vmem:[%s2] sm:$0x1]
    %v30 = vlaneseq
    %v31 = vshrl.u32 %v30, 7
    %v32 = vsub.s32 0, %v31
    %v33 = vrot.slane %v28, %v32
    %v39 = vunpack.c.l.b16 %v16
    %v40 = vunpack.c.l.b16 %v17
    %v41 = vunpack.c.l.b16 %v18
    %v42 = vunpack.c.l.b16 %v19
    %v43 = vpack.c.b16 %v40, %v39
    %v44 = vpack.c.b16 %v42, %v41
    %v53 = vunpack.c.l.b16 %v20
    %v54 = vunpack.c.l.b16 %v21
    %v55 = vunpack.c.l.b16 %v22
    %v56 = vunpack.c.l.b16 %v23
    %v57 = vunpack.c.l.b16 %v24
    %v58 = vunpack.c.l.b16 %v25
    %v59 = vunpack.c.l.b16 %v26
    %v60 = vunpack.c.l.b16 %v27
    %v61 = vpack.c.b16 %v54, %v53
    %v62 = vpack.c.b16 %v56, %v55
    %v63 = vpack.c.b16 %v58, %v57
    %v64 = vpack.c.b16 %v60, %v59
    %vm69 = vcmask 523264
    %v71 = vsel %vm69, %v43, 0
    %v74 = vsel %vm69, %v44, 0
    %76 = vmatprep.subr.bf16.mxu0 0
    %77 = vmatpush1.bf16.msra.mxu0 %v61
    %78 = vmatprep.subr.bf16.mxu0 0
    %79 = vmatpush1.bf16.msra.mxu0 %v62
    %80 = vmatprep.subr.bf16.mxu0 0
    %81 = vmatpush1.bf16.msra.mxu0 %v63
    %82 = vmatprep.subr.bf16.mxu0 0
    %83 = vmatpush1.bf16.msra.mxu0 %v64
    %84 = vmatprep.subr.bf16.mxu0 0
    %85 = vmatpush1.bf16.msra.mxu0 0
    %86 = vmatprep.subr.bf16.mxu0 0
    %87 = vmatpush1.bf16.msra.mxu0 0
    %88 = vmatprep.subr.bf16.mxu0 0
    %89 = vmatpush1.bf16.msra.mxu0 0
    %90 = vmatprep.subr.bf16.mxu0 0
    %91 = vmatpush1.bf16.msra.mxu0 0
    %92 = vmatprep.subr.bf16.mxu0 0
    %93 = vmatpush1.bf16.msra.mxu0 0
    %94 = vmatprep.subr.bf16.mxu0 0
    %95 = vmatpush1.bf16.msra.mxu0 0
    %96 = vmatprep.subr.bf16.mxu0 0
    %97 = vmatpush1.bf16.msra.mxu0 0
    %98 = vmatprep.subr.bf16.mxu0 0
    %99 = vmatpush1.bf16.msra.mxu0 0
    %100 = vmatprep.subr.bf16.mxu0 0
    %101 = vmatpush1.bf16.msra.mxu0 0
    %102 = vmatprep.subr.bf16.mxu0 0
    %103 = vmatpush1.bf16.msra.mxu0 0
    %104 = vmatprep.subr.bf16.mxu0 0
    %105 = vmatpush1.bf16.msra.mxu0 0
    %106 = vmatprep.subr.bf16.mxu0 0
    %107 = vmatpush1.bf16.msra.mxu0 0
    %108 = vmatprep.mubr.bf16.mxu0 0
    %109 = vmatmul.mubr.bf16.gmra.mrb[0].mxu0 %v71
    %v110 = vpop.f32.mrb[0].mxu0
    %v111 = vadd.f32 %v33, %v110
    %v112 = vpop.f32.mrb[0].mxu0
    %v113 = vpop.f32.mrb[0].mxu0
    %v114 = vadd.f32 %v33, %v113
    %v115 = vpop.f32.mrb[0].mxu0
    %116 = vmatprep.mubr.bf16.mxu0 0
    %117 = vmatmul.mubr.bf16.gmra.mrb[0].mxu0 %v74
    %v118 = vpop.f32.mrb[0].mxu0
    %v119 = vadd.f32 %v33, %v118
    %v120 = vpop.f32.mrb[0].mxu0
    %v121 = vpop.f32.mrb[0].mxu0
    %v122 = vadd.f32 %v33, %v121
    %v123 = vpop.f32.mrb[0].mxu0
    %124 = vdwg.mxu0
    %125 = vst [vmem:[#allocation2] sm:$0xff] %v111
    %126 = vst [vmem:[#allocation2 + $0x8] sm:$0xff] %v114
    %127 = vst [vmem:[#allocation2 + $0x10] sm:$0xff] %v119
    %128 = vst [vmem:[#allocation2 + $0x18] sm:$0xff] %v122
    // Predicated region
    $region14: #{_lambda_.1} parent=1 // pred_check
      _
    $region15: #{_lambda_.1} parent=1 // pred_check_branch
      %130 = sbr.rel (0) target = $region17
    $region16: #{_lambda_.1} parent=1 // pred_region
      %s132 = ssub.s32 512, 512
      %133 = vsyncadd [#allocation3], %s132
      %s134 = sshll.u32 [#allocation2], 4
      %s135 = int_to_ptr.vmem [resolvable:$true] %s134
      %140 = dma.vmem_to_hbm [thread:$0]  %s135, 512, %s3, [#allocation3], 128, 128, 8
    $region17: #{_lambda_.1} parent=1 // pred_fallthru
      _
    // Predicated region
    $region18: #{_lambda_.1} parent=1 // pred_check
      _
    $region19: #{_lambda_.1} parent=1 // pred_check_branch
      %142 = sbr.rel (0) target = $region21
    $region20: #{_lambda_.1} parent=1 // pred_region
      %143 = dma.done [#allocation3], 512
    $region21: #{_lambda_.1} parent=1 // pred_fallthru
      _
    %144 = vsyncpa [#allocation3], 1

</llo_original>
